<compile_context>
chip_gen: v7x
topology: tpu7x:2x2x1
jax: 0.10.0
libtpu: 0.0.40
codegen_flags: <defaults>
</compile_context>

<pallas_src>
import math
from functools import partial

import jax
import jax.numpy as jnp
import numpy as np
from jax.experimental import pallas as pl
from jax.experimental.pallas import tpu as pltpu

# e3nn 'integral' normalization constants for the real spherical harmonics
C0 = 1.0 / (2.0 * math.sqrt(math.pi))          # Y_0
C1 = math.sqrt(3.0 / (4.0 * math.pi))          # Y_1 ~ C1 * (x, y, z), normalize=False

F_IN = 4    # 1x0e + 1x1o
D_SH = 4    # 1x0e + 1x1e
D_OUT = 4   # 1x0e + 1x1o

_LANE_QUANTUM = 256   # sites/grid-step multiple of this -> tile//2 lanes % 128 == 0


def _round_up(x, m):
    return ((x + m - 1) // m) * m


def _cdiv(a, b):
    return -(-a // b)


# ----------------------------------------------------------------------------
# Pallas kernel: one fused bilinear tensor product per packed site tile.
#   x_ref : (2*d_half, TILE//2) bf16  rows [0, d_half): even sites
#                                     rows [d_half, 2*d_half): odd sites
#           each half = [d_feat stencil-tap features | 3 spin | zero pad]
#   w_ref : (16, d_feat) f32          folded CG x path-norm x SH-const x weights
#   o_ref : (8, TILE//2) f32          rows 0-3 even-site out, rows 4-7 odd-site
# ----------------------------------------------------------------------------
def spinconv_kernel(x_ref, w_ref, o_ref, *, d_feat, d_half):
    x = x_ref[...].astype(jnp.float32)        # one bulk bf16 -> f32 cast (VPU)
    w = w_ref[...]

    def one_half(xh):
        f = xh[:d_feat, :]                    # stencil-gathered input features
        s = xh[d_feat:d_feat + 3, :]          # raw spin components (x, y, z)
        # Single fused MXU matmul: rows j*4+o hold sh_const[j] * B_eff[:, j, o].
        # Mosaic's f32 matmul is exact at this contraction depth; pin
        # precision=HIGHEST if bit-exactness vs the PyTorch f32 module matters.
        tmp = jnp.dot(w, f, preferred_element_type=jnp.float32)   # (16, TILE//2)
        # Combine the 4 spherical-harmonic groups (Y0 const already in W).
        return (tmp[0:4, :]
                + s[0:1, :] * tmp[4:8, :]
                + s[1:2, :] * tmp[8:12, :]
                + s[2:3, :] * tmp[12:16, :])

    # Pack both halves into one full 8-sublane, lane-dense store (no masked
    # partial stores, no sublane write amplification).
    o_ref[...] = jnp.concatenate(
        [one_half(x[:d_half]), one_half(x[d_half:])], axis=0).astype(o_ref.dtype)
    # TODO(synk): hardcodes l_f = 1 spherical harmonics; higher l_f adds more
    # (elementwise polynomial in spin) * row-group terms of the same form.


# ----------------------------------------------------------------------------
# Stencil bookkeeping (faithful to the PyTorch source: offsets i = 0..K-1,
# so the i=0 taps duplicate the center tap).
# ----------------------------------------------------------------------------
def stencil_shifts(kernel_size):
    taps = [(0, 0)]
    for i in range(kernel_size):
        taps += [(i, 0), (-i, 0), (0, i), (0, -i)]
    unique, tap_to_u = [], []
    for t in taps:
        if t in unique:
            tap_to_u.append(unique.index(t))
        else:
            unique.append(t)
            tap_to_u.append(len(unique) - 1)
    return taps, unique, tap_to_u


# ----------------------------------------------------------------------------
# Glue: full sparse im2col with circular padding (reference path only)
# ----------------------------------------------------------------------------
def spin2colsq2d_sparse(feat, kernel_size):
    N, Lx, Ly, f = feat.shape
    cols = [feat]
    for i in range(kernel_size):
        cols.append(jnp.roll(feat, i, axis=1))    # col slot 4i+1
        cols.append(jnp.roll(feat, -i, axis=1))   # col slot 4i+2
        cols.append(jnp.roll(feat, i, axis=2))    # col slot 4i+3
        cols.append(jnp.roll(feat, -i, axis=2))   # col slot 4i+4
    col = jnp.stack(cols, axis=3)                 # (N, Lx, Ly, 4K+1, f)
    return col.reshape(N, Lx, Ly, -1)


# ----------------------------------------------------------------------------
# Glue: assemble the folded bilinear tensor B[k_in, k_sh, k_out]
#   ir_in (per tap) = 1x0e + 1x1o ; filter = 1x0e + 1x1e ; ir_out = 1x0e + 1x1o
#   allowed uvw paths per tap s:
#     A: (0e, Y0) -> 0e     B: (1o, Y0) -> 1o     C: (1o, Y1) -> 1o
# ----------------------------------------------------------------------------
def build_folded_tp_tensor(w_a, w_b, w_c, kernel_size):
    S = 4 * kernel_size + 1
    D_in = S * F_IN
    B = np.zeros((D_in, D_SH, D_OUT), np.float32)

    # e3nn irrep_normalization='component', path_normalization='element'
    norm_a = math.sqrt(1.0 / S)          # S paths into the 0e output
    norm_bc = math.sqrt(3.0 / (2 * S))   # 2S paths into the 1o output

    w3j_101 = np.eye(3) / math.sqrt(3.0)                 # (1 x 0 -> 1)
    eps = np.zeros((3, 3, 3))
    eps[0, 1, 2] = eps[1, 2, 0] = eps[2, 0, 1] = 1.0
    eps[0, 2, 1] = eps[2, 1, 0] = eps[1, 0, 2] = -1.0
    w3j_111 = eps / math.sqrt(6.0)                       # (1 x 1 -> 1)

    for s in range(S):
        base = s * F_IN
        B[base + 0, 0, 0] += norm_a * w_a[s]
        for i in range(3):
            for k in range(3):
                B[base + 1 + i, 0, 1 + k] += norm_bc * w_b[s] * w3j_101[i, k]
        for i in range(3):
            for j in range(3):
                for k in range(3):
                    B[base + 1 + i, 1 + j, 1 + k] += norm_bc * w_c[s] * w3j_111[i, j, k]
    return jnp.asarray(B)


# ----------------------------------------------------------------------------
# Tile / grid selection: multiple of 256 sites per step, and >= 2 even grid
# steps when P allows (v7x has 2 TensorCores; the "parallel" axis shards
# across them).  Larger default tile for v5e/v6e HBM saturation.
# ----------------------------------------------------------------------------
def _choose_tile(P, tile_req):
    tile_req = max(_LANE_QUANTUM, _round_up(tile_req, _LANE_QUANTUM))
    n = max(1, _cdiv(P, tile_req))
    if P > _LANE_QUANTUM:
        n = max(n, 2)
        if n % 2:
            n += 1
    return _round_up(_cdiv(P, n), _LANE_QUANTUM)


# ----------------------------------------------------------------------------
# Wrapper: fold duplicate taps + SH constants into one matmul weight, build a
# single bf16 feature-major lane-dense stream with even/odd site packing on
# sublanes, 1-D "parallel" grid over packed site tiles.
# ----------------------------------------------------------------------------
def spin_conv_sq2d_sparse(feat, spin, B, *, kernel_size, tile=8192,
                          stream_dtype=jnp.bfloat16):
    N, Lx, Ly, f_in = feat.shape
    assert f_in == F_IN
    S = 4 * kernel_size + 1
    _, unique, tap_to_u = stencil_shifts(kernel_size)
    n_u = len(unique)
    d_feat = n_u * F_IN
    D = d_feat + 3                      # taps + spin rows per site
    Dp = _round_up(D, 8)                # pad to sublane multiple (no hidden pad)

    # --- fold duplicate stencil taps into the bilinear tensor ---------------
    B4 = B.reshape(S, F_IN, D_SH, D_OUT)                        # [s, i, j, o]
    B_eff = jnp.zeros((n_u, F_IN, D_SH, D_OUT), B.dtype)
    B_eff = B_eff.at[jnp.asarray(tap_to_u)].add(B4)             # [u, i, j, o]

    # --- fold SH constants; flatten to one matmul weight (16, d_feat), f32 --
    shc = jnp.asarray([C0, C1, C1, C1], jnp.float32)
    W = jnp.einsum('uijo,j->joui', B_eff, shc)                  # [j, o, u, i]
    W = W.reshape(D_SH * D_OUT, d_feat).astype(jnp.float32)

    # --- build the feature-major, lane-dense stream directly (no concat-then-
    #     transpose double pass): unique stencil taps + spin, bf16 -------------
    def to_rows(a):                       # (N, Lx, Ly, C) -> (C, P)
        return jnp.moveaxis(a, -1, 0).reshape(a.shape[-1], -1)

    rows = []
    for (dx, dy) in unique:
        t = feat if (dx == 0 and dy == 0) else jnp.roll(feat, (dx, dy), axis=(1, 2))
        rows.append(to_rows(t))
    rows.append(to_rows(spin))
    x = jnp.concatenate(rows, axis=0).astype(stream_dtype)      # (D, P)
    # TODO(synk): for kernel_size > 1 gather the taps in-pipeline via per-tap
    # shifted index_maps over a halo-padded feat instead of materializing n_u
    # rolled copies (keeps HBM input traffic ~1x regardless of kernel_size).

    P = N * Lx * Ly
    tile = _choose_tile(P, tile)
    Pp = _round_up(P, tile)
    x = jnp.pad(x, ((0, Dp - D), (0, Pp - P)))                  # (Dp, Pp)

    # --- even/odd site packing onto sublanes: (2*Dp, Pp//2) ------------------
    xp = jnp.moveaxis(x.reshape(Dp, Pp // 2, 2), -1, 0).reshape(2 * Dp, Pp // 2)

    tile_h = tile // 2
    grid = Pp // tile
    cost = pl.CostEstimate(
        flops=int((2 * D_SH * D_OUT * d_feat + 8 * D_OUT) * Pp),
        transcendentals=0,
        bytes_accessed=int(Dp * Pp * jnp.dtype(stream_dtype).itemsize
                           + D_SH * D_OUT * d_feat * 4
                           + D_OUT * Pp * 4))

    out = pl.pallas_call(
        partial(spinconv_kernel, d_feat=d_feat, d_half=Dp),
        out_shape=jax.ShapeDtypeStruct((2 * D_OUT, Pp // 2), jnp.float32),
        grid_spec=pltpu.PrefetchScalarGridSpec(
            num_scalar_prefetch=0,
            grid=(grid,),
            in_specs=[
                pl.BlockSpec((2 * Dp, tile_h), lambda i: (0, i)),
                pl.BlockSpec((D_SH * D_OUT, d_feat), lambda i: (0, 0)),
            ],
            out_specs=pl.BlockSpec((2 * D_OUT, tile_h), lambda i: (0, i)),
        ),
        compiler_params=pltpu.CompilerParams(
            dimension_semantics=("parallel",)),
        cost_estimate=cost,
    )(xp, W)

    # --- unpack even/odd sublane groups and restore (N, Lx, Ly, f_out) -------
    out = jnp.moveaxis(out.reshape(2, D_OUT, Pp // 2), 0, -1).reshape(D_OUT, Pp)
    return out[:, :P].T.reshape(N, Lx, Ly, D_OUT)


# ----------------------------------------------------------------------------
# Pure-JAX reference (same math, no Pallas, no tap folding) for correctness
# ----------------------------------------------------------------------------
def reference(feat, spin, B, kernel_size):
    col = spin2colsq2d_sparse(feat, kernel_size)
    sh = jnp.concatenate(
        [C0 * jnp.ones(spin.shape[:-1] + (1,), spin.dtype), C1 * spin], axis=-1)
    return jnp.einsum("...i,...j,ijo->...o", col, sh, B)


if __name__ == "__main__":
    key = jax.random.PRNGKey(0)
    k_feat, k_spin, k_wa, k_wb, k_wc = jax.random.split(key, 5)

    N, Lx, Ly = 2, 16, 16
    kernel_size = 1
    S = 4 * kernel_size + 1

    feat = jax.random.normal(k_feat, (N, Lx, Ly, F_IN), jnp.float32)
    spin = jax.random.normal(k_spin, (N, Lx, Ly, 3), jnp.float32)

    # Deterministic synthetic TensorProduct weights (one scalar per uvw path).
    w_a = np.asarray(jax.random.normal(k_wa, (S,), jnp.float32))
    w_b = np.asarray(jax.random.normal(k_wb, (S,), jnp.float32))
    w_c = np.asarray(jax.random.normal(k_wc, (S,), jnp.float32))
    B = build_folded_tp_tensor(w_a, w_b, w_c, kernel_size)

    # P = 512 sites -> tile 256 sites (128 packed lanes), grid of 2 "parallel"
    # steps so both v7x TensorCores are exercised.
    out = spin_conv_sq2d_sparse(feat, spin, B, kernel_size=kernel_size)
    out = jax.block_until_ready(out)

    # The Pallas path streams bf16-quantized inputs (f32 accumulation inside);
    # compare against the pure-JAX f32 reference on the SAME quantized inputs
    # so the test validates the kernel, not the input quantization.  Pass
    # stream_dtype=jnp.float32 above to reproduce the module's f32 numerics
    # exactly (at 2x HBM input traffic).
    feat_q = feat.astype(jnp.bfloat16).astype(jnp.float32)
    spin_q = spin.astype(jnp.bfloat16).astype(jnp.float32)
    ref = jax.block_until_ready(reference(feat_q, spin_q, B, kernel_size))
    if not bool(jnp.allclose(out, ref, atol=1e-4, rtol=1e-4)):
        raise AssertionError("Pallas kernel does not match reference")

    print("KERNEL_OK")
</pallas_src>

<mosaic_0001>
module attributes {stable_mosaic.version = 11 : i64} {
  func.func @spinconv_kernel(%arg0: i32, %arg1: memref<16x128xbf16, #tpu.memory_space<vmem>>, %arg2: memref<16x4xf32, #tpu.memory_space<vmem>>, %arg3: memref<8x128xf32, #tpu.memory_space<vmem>>) attributes {dimension_semantics = [#tpu.dimension_semantics<parallel>], iteration_bounds = array<i64: 2>, scalar_prefetch = 0 : i64, scratch_operands = 0 : i64, tpu.core_type = #tpu.core_type<tc>, window_params = [{transform_indices = @transform_0, window_bounds = array<i64: 16, 128>}, {pipeline_mode = #tpu.pipeline_mode<synchronous>, transform_indices = @transform_1, window_bounds = array<i64: 16, 4>}, {transform_indices = @transform_2, window_bounds = array<i64: 8, 128>}]} {
    %c0 = arith.constant 0 : index
    %c0_0 = arith.constant 0 : index
    %0 = vector.load %arg1[%c0, %c0_0] : memref<16x128xbf16, #tpu.memory_space<vmem>>, vector<16x128xbf16>
    %1 = arith.extf %0 : vector<16x128xbf16> to vector<16x128xf32>
    %c0_1 = arith.constant 0 : index
    %c0_2 = arith.constant 0 : index
    %2 = vector.load %arg2[%c0_1, %c0_2] : memref<16x4xf32, #tpu.memory_space<vmem>>, vector<16x4xf32>
    %3 = vector.extract_strided_slice %1 {offsets = [0, 0], sizes = [8, 128], strides = [1, 1]} : vector<16x128xf32> to vector<8x128xf32>
    %4 = vector.extract_strided_slice %3 {offsets = [0, 0], sizes = [4, 128], strides = [1, 1]} : vector<8x128xf32> to vector<4x128xf32>
    %5 = vector.extract_strided_slice %3 {offsets = [4, 0], sizes = [3, 128], strides = [1, 1]} : vector<8x128xf32> to vector<3x128xf32>
    %cst = arith.constant dense<0.000000e+00> : vector<16x128xf32>
    %6 = tpu.matmul %2, %4, %cst {dimension_numbers = #tpu.dot_dimension_numbers<[1], [0], [0], [1], [0, 0, 1, 1], [], []>} : vector<16x4xf32>, vector<4x128xf32>, vector<16x128xf32> -> vector<16x128xf32>
    %7 = vector.extract_strided_slice %6 {offsets = [0, 0], sizes = [4, 128], strides = [1, 1]} : vector<16x128xf32> to vector<4x128xf32>
    %8 = vector.extract_strided_slice %5 {offsets = [0, 0], sizes = [1, 128], strides = [1, 1]} : vector<3x128xf32> to vector<1x128xf32>
    %9 = vector.extract_strided_slice %6 {offsets = [4, 0], sizes = [4, 128], strides = [1, 1]} : vector<16x128xf32> to vector<4x128xf32>
    %10 = vector.broadcast %8 : vector<1x128xf32> to vector<4x128xf32>
    %11 = arith.mulf %10, %9 : vector<4x128xf32>
    %12 = arith.addf %7, %11 : vector<4x128xf32>
    %13 = vector.extract_strided_slice %5 {offsets = [1, 0], sizes = [1, 128], strides = [1, 1]} : vector<3x128xf32> to vector<1x128xf32>
    %14 = vector.extract_strided_slice %6 {offsets = [8, 0], sizes = [4, 128], strides = [1, 1]} : vector<16x128xf32> to vector<4x128xf32>
    %15 = vector.broadcast %13 : vector<1x128xf32> to vector<4x128xf32>
    %16 = arith.mulf %15, %14 : vector<4x128xf32>
    %17 = arith.addf %12, %16 : vector<4x128xf32>
    %18 = vector.extract_strided_slice %5 {offsets = [2, 0], sizes = [1, 128], strides = [1, 1]} : vector<3x128xf32> to vector<1x128xf32>
    %19 = vector.extract_strided_slice %6 {offsets = [12, 0], sizes = [4, 128], strides = [1, 1]} : vector<16x128xf32> to vector<4x128xf32>
    %20 = vector.broadcast %18 : vector<1x128xf32> to vector<4x128xf32>
    %21 = arith.mulf %20, %19 : vector<4x128xf32>
    %22 = arith.addf %17, %21 : vector<4x128xf32>
    %23 = vector.extract_strided_slice %1 {offsets = [8, 0], sizes = [8, 128], strides = [1, 1]} : vector<16x128xf32> to vector<8x128xf32>
    %24 = vector.extract_strided_slice %23 {offsets = [0, 0], sizes = [4, 128], strides = [1, 1]} : vector<8x128xf32> to vector<4x128xf32>
    %25 = vector.extract_strided_slice %23 {offsets = [4, 0], sizes = [3, 128], strides = [1, 1]} : vector<8x128xf32> to vector<3x128xf32>
    %cst_3 = arith.constant dense<0.000000e+00> : vector<16x128xf32>
    %26 = tpu.matmul %2, %24, %cst_3 {dimension_numbers = #tpu.dot_dimension_numbers<[1], [0], [0], [1], [0, 0, 1, 1], [], []>} : vector<16x4xf32>, vector<4x128xf32>, vector<16x128xf32> -> vector<16x128xf32>
    %27 = vector.extract_strided_slice %26 {offsets = [0, 0], sizes = [4, 128], strides = [1, 1]} : vector<16x128xf32> to vector<4x128xf32>
    %28 = vector.extract_strided_slice %25 {offsets = [0, 0], sizes = [1, 128], strides = [1, 1]} : vector<3x128xf32> to vector<1x128xf32>
    %29 = vector.extract_strided_slice %26 {offsets = [4, 0], sizes = [4, 128], strides = [1, 1]} : vector<16x128xf32> to vector<4x128xf32>
    %30 = vector.broadcast %28 : vector<1x128xf32> to vector<4x128xf32>
    %31 = arith.mulf %30, %29 : vector<4x128xf32>
    %32 = arith.addf %27, %31 : vector<4x128xf32>
    %33 = vector.extract_strided_slice %25 {offsets = [1, 0], sizes = [1, 128], strides = [1, 1]} : vector<3x128xf32> to vector<1x128xf32>
    %34 = vector.extract_strided_slice %26 {offsets = [8, 0], sizes = [4, 128], strides = [1, 1]} : vector<16x128xf32> to vector<4x128xf32>
    %35 = vector.broadcast %33 : vector<1x128xf32> to vector<4x128xf32>
    %36 = arith.mulf %35, %34 : vector<4x128xf32>
    %37 = arith.addf %32, %36 : vector<4x128xf32>
    %38 = vector.extract_strided_slice %25 {offsets = [2, 0], sizes = [1, 128], strides = [1, 1]} : vector<3x128xf32> to vector<1x128xf32>
    %39 = vector.extract_strided_slice %26 {offsets = [12, 0], sizes = [4, 128], strides = [1, 1]} : vector<16x128xf32> to vector<4x128xf32>
    %40 = vector.broadcast %38 : vector<1x128xf32> to vector<4x128xf32>
    %41 = arith.mulf %40, %39 : vector<4x128xf32>
    %42 = arith.addf %37, %41 : vector<4x128xf32>
    %43 = tpu.concatenate %22, %42 in 0 : vector<4x128xf32>, vector<4x128xf32> -> vector<8x128xf32>
    %c0_4 = arith.constant 0 : index
    %c0_5 = arith.constant 0 : index
    %44 = vector.load %arg3[%c0_4, %c0_5] : memref<8x128xf32, #tpu.memory_space<vmem>>, vector<8x128xf32>
    tpu.vector_store %arg3[%c0_4, %c0_5], %43 {strides = array<i32>} : memref<8x128xf32, #tpu.memory_space<vmem>>, vector<8x128xf32>,
    return
  }
  func.func @transform_0(%arg0: i32) -> (i32, i32) {
    %c0_i32 = arith.constant 0 : i32
    %c0_i32_0 = arith.constant 0 : i32
    return %c0_i32, %arg0 : i32, i32
  }
  func.func @transform_1(%arg0: i32) -> (i32, i32) {
    %c0_i32 = arith.constant 0 : i32
    %c0_i32_0 = arith.constant 0 : i32
    %c0_i32_1 = arith.constant 0 : i32
    return %c0_i32, %c0_i32_0 : i32, i32
  }
  func.func @transform_2(%arg0: i32) -> (i32, i32) {
    %c0_i32 = arith.constant 0 : i32
    %c0_i32_0 = arith.constant 0 : i32
    return %c0_i32, %arg0 : i32, i32
  }
}

</mosaic_0001>

<llo_original>
// kernel: tpu_custom_call.1
$region0: #{tpu_custom_call.1}
  #allocation0 [shape = 'u32[]', space=smem, size = 0x4, offset = 0x4, fixed_abs, tag = 'smem constant byte address 0x4 - core index']
  #allocation1 [shape = 'u32[144,128]{1,0:T(1,128)}', space=vmem, size = 0x12000, scoped, tag = 'internal scratch']
  %s0 = inlined_call_operand.vmem [shape: bf16[16,256], index: 0, kind: input, shape index: {}]
  %s1 = inlined_call_operand.vmem [shape: f32[16,4], index: 1, kind: input, shape index: {}]
  %s2 = inlined_call_operand.hbm [shape: f32[8,256], index: 2, kind: output, shape index: {}]
  %s3 = sld [smem:[#allocation0]]
  $region82: #{tpu_custom_call.1} parent=0
    _
  %s5 = ssub.s32 1, %s3
  %s6 = scalar_select 0, %s5, %s3
  $region1: #{tpu_custom_call.1} parent=0
    #allocation2 [shape = 'u8[8192]{0}', space=vmem, size = 0x2000, scoped, tag = 'input window, operand 0']
    #allocation3 [shape = 'u8[8192]{0}', space=vmem, size = 0x2000, scoped, tag = 'output window, operand 0']
    #allocation4 [shape = 's32[2]{0}', space=sflag, size = 0x8, scoped, tag = 'scoped memory for tpu_custom_call.1']
    %7 = vsyncpa [#allocation4], 0
    %s8 = scalar_lea.sflag [#allocation4], 1
    %9 = vsyncpa %s8, 0
    loop: start=0, step=1, limit=4
    $region2: #{tpu_custom_call.1} parent=1 // loop_pre_header
      _
    $region3: #{tpu_custom_call.1} parent=1 // loop_header
      %s11 = sphi 0, %s15
      %p12 = scmp.ge.s32.totalorder %s11, 4
      %s21 = sphi 0, %s23
      %s24 = sphi 0, %s21
      %s25 = sphi 0, %s24
      %s41 = sphi 0, %s25
      %s45 = sphi 0, %s45
      %s47 = sphi 0, %s45
      %s48 = sphi 0, %s47
      %s62 = sphi 0, %s48
      %s68 = sphi 0, %s70
      %s71 = sphi 0, %s68
      %s72 = sphi 0, %s71
      %s88 = sphi 0, %s72
    $region4: #{tpu_custom_call.1} parent=1 // loop_header_branch
      %14 = sbr.rel (%p12) target = $region8
    $region5: #{tpu_custom_call.1} parent=1 // loop_body
      %s16 = ssub.s32 %s11, 1
      %s17 = ssub.s32 %s11, 2
      %s18 = sadd.s32 %s11, 1
      %s19 = ssub.s32 %s11, %s18
      %p20 = scmp.eq.s32.totalorder %s19, 0
      %s22 = sadd.s32 %s21, 1
      %s23 = scalar_select %p20, %s21, %s22
      %p26 = pneg %p20
      %p27 = scmp.eq.s32.totalorder %s11, 1
      %p28 = por %p26, %p27
      %p29 = scmp.ne.s32.totalorder %s21, %s24
      %p30 = scmp.eq.s32.totalorder %s11, 0
      %p31 = por %p29, %p30
      %p32 = scmp.ne.s32.totalorder %s21, %s24
      %p33 = scmp.eq.s32.totalorder %s16, 1
      %p34 = por %p32, %p33
      %p35 = scmp.ne.s32.totalorder %s24, %s25
      %p36 = scmp.eq.s32.totalorder %s16, 0
      %p37 = por %p35, %p36
      %p38 = scmp.ne.s32.totalorder %s24, %s25
      %p39 = scmp.eq.s32.totalorder %s17, 1
      %p40 = por %p38, %p39
      %p42 = scmp.ne.s32.totalorder %s25, %s41
      %p43 = scmp.eq.s32.totalorder %s17, 0
      %p44 = por %p42, %p43
      %s46 = sadd.s32 %s45, 1
      %p49 = scmp.eq.s32.totalorder %s11, 1
      %p50 = scmp.ne.s32.totalorder %s45, %s47
      %p51 = scmp.eq.s32.totalorder %s11, 0
      %p52 = por %p50, %p51
      %p53 = scmp.ne.s32.totalorder %s45, %s47
      %p54 = scmp.eq.s32.totalorder %s16, 1
      %p55 = por %p53, %p54
      %p56 = scmp.ne.s32.totalorder %s47, %s48
      %p57 = scmp.eq.s32.totalorder %s16, 0
      %p58 = por %p56, %p57
      %p59 = scmp.ne.s32.totalorder %s47, %s48
      %p60 = scmp.eq.s32.totalorder %s17, 1
      %p61 = por %p59, %p60
      %p63 = scmp.ne.s32.totalorder %s48, %s62
      %p64 = scmp.eq.s32.totalorder %s17, 0
      %p65 = por %p63, %p64
      %s66 = ssub.s32 %s11, %s18
      %p67 = scmp.eq.s32.totalorder %s66, 0
      %s69 = sadd.s32 %s68, 1
      %s70 = scalar_select %p67, %s68, %s69
      %p73 = pneg %p67
      %p74 = scmp.eq.s32.totalorder %s11, 1
      %p75 = por %p73, %p74
      %p76 = scmp.ne.s32.totalorder %s68, %s71
      %p77 = scmp.eq.s32.totalorder %s11, 0
      %p78 = por %p76, %p77
      %p79 = scmp.ne.s32.totalorder %s68, %s71
      %p80 = scmp.eq.s32.totalorder %s16, 1
      %p81 = por %p79, %p80
      %p82 = scmp.ne.s32.totalorder %s71, %s72
      %p83 = scmp.eq.s32.totalorder %s16, 0
      %p84 = por %p82, %p83
      %p85 = scmp.ne.s32.totalorder %s71, %s72
      %p86 = scmp.eq.s32.totalorder %s17, 1
      %p87 = por %p85, %p86
      %p89 = scmp.ne.s32.totalorder %s72, %s88
      %p90 = scmp.eq.s32.totalorder %s17, 0
      %p91 = por %p89, %p90
      %p92 = scmp.le.s32.totalorder 1, %s11
      %p93 = scmp.lt.s32.totalorder %s11, 3
      %p94 = pnand %p92, %p93
      %p95 = pneg %p94
      // Predicated region
      $region9: #{tpu_custom_call.1} parent=5 // pred_check
        _
      $region10: #{tpu_custom_call.1} parent=5 // pred_check_branch
        %97 = sbr.rel (%p94) target = $region12
      $region11: #{tpu_custom_call.1} parent=5 // pred_region
        %s98 = ssub.s32 %s11, 1
        // Predicated region
        $region13: #{tpu_custom_call.1} parent=11 // pred_check
          %p99 = pneg %p58
        $region14: #{tpu_custom_call.1} parent=11 // pred_check_branch
          %101 = sbr.rel (%p99) target = $region16
        $region15: #{tpu_custom_call.1} parent=11 // pred_region
          _
        $region16: #{tpu_custom_call.1} parent=11 // pred_fallthru
          _
      $region12: #{tpu_custom_call.1} parent=5 // pred_fallthru
        _
      %p102 = scmp.lt.s32.totalorder %s11, 2
      // Predicated region
      $region17: #{tpu_custom_call.1} parent=5 // pred_check
        %p103 = pneg %p102
      $region18: #{tpu_custom_call.1} parent=5 // pred_check_branch
        %105 = sbr.rel (%p103) target = $region20
      $region19: #{tpu_custom_call.1} parent=5 // pred_region
        // Predicated region
        $region21: #{tpu_custom_call.1} parent=19 // pred_check
          %p106 = pneg %p31
        $region22: #{tpu_custom_call.1} parent=19 // pred_check_branch
          %108 = sbr.rel (%p106) target = $region24
        $region23: #{tpu_custom_call.1} parent=19 // pred_region
          %s109 = sand.u32 %s21, 1
          %s110 = sand.u32 %s21, 1
          %s111 = smul.addr %s110, 8
          %s112 = scalar_lea.vmem [#allocation2], %s111
          %s113 = smul.addr %s11, 4
          %s114 = scalar_lea.vmem %s0, %s113
          // Predicated region
          $region25: #{tpu_custom_call.1} parent=23 // pred_check
            _
          $region26: #{tpu_custom_call.1} parent=23 // pred_check_branch
            %116 = sbr.rel (0) target = $region28
          $region27: #{tpu_custom_call.1} parent=23 // pred_region
            // Predicated region
            $region29: #{tpu_custom_call.1} parent=27 // pred_check
              _
            $region30: #{tpu_custom_call.1} parent=27 // pred_check_branch
              %118 = sbr.rel target = $region32
            $region31: #{tpu_custom_call.1} parent=27 // pred_region
              // Predicated region
              $region44: #{tpu_custom_call.1} parent=31 // pred_check
                _
              $region45: #{tpu_custom_call.1} parent=31 // pred_check_branch
                %135 = sbr.rel (0) target = $region47
              $region46: #{tpu_custom_call.1} parent=31 // pred_region
                loop: start=0, step=1, limit=1
                $region48: #{tpu_custom_call.1} parent=46 // loop_pre_header
                  _
                $region49: #{tpu_custom_call.1} parent=46 // loop_header
                  %s137 = sphi 0, %s141
                  %p138 = scmp.ge.s32.totalorder %s137, 1
                  %s142 = sphi %s114, %s114
                  %s143 = sphi %s112, %s112
                $region50: #{tpu_custom_call.1} parent=46 // loop_header_branch
                  %140 = sbr.rel (%p138) target = $region54
                $region51: #{tpu_custom_call.1} parent=46 // loop_body
                  _
                $region52: #{tpu_custom_call.1} parent=46 // loop_footer
                  %s141 = sadd.s32 1, %s137
                $region53: #{tpu_custom_call.1} parent=46 // loop_footer_branch
                  %136 = sbr.rel target = $region49
                $region54: #{tpu_custom_call.1} parent=46 // loop_exit
                  _
                loop: start=0, step=1, limit=1
                $region55: #{tpu_custom_call.1} parent=46 // loop_pre_header
                  _
                $region56: #{tpu_custom_call.1} parent=46 // loop_header
                  %s146 = sphi 0, %s150
                  %p147 = scmp.ge.s32.totalorder %s146, 1
                  %s151 = sphi %s114, %s114
                  %s152 = sphi %s112, %s112
                $region57: #{tpu_custom_call.1} parent=46 // loop_header_branch
                  %149 = sbr.rel (%p147) target = $region61
                $region58: #{tpu_custom_call.1} parent=46 // loop_body
                  %v153 = vld [vmem:[%s151] sm:$0xf]
                  %154 = vst [vmem:[%s152] sm:$0xf] %v153
                  %v155 = vld [vmem:[%s151 + $0x8] sm:$0xf]
                  %156 = vst [vmem:[%s152 + $0x4] sm:$0xf] %v155
                $region59: #{tpu_custom_call.1} parent=46 // loop_footer
                  %s150 = sadd.s32 1, %s146
                $region60: #{tpu_custom_call.1} parent=46 // loop_footer_branch
                  %145 = sbr.rel target = $region56
                $region61: #{tpu_custom_call.1} parent=46 // loop_exit
                  _
              $region47: #{tpu_custom_call.1} parent=31 // pred_fallthru
                _
            $region32: #{tpu_custom_call.1} parent=27 // pred_fallthru
              _
            // Predicated region
            $region33: #{tpu_custom_call.1} parent=27 // pred_check
              _
            $region34: #{tpu_custom_call.1} parent=27 // pred_check_branch
              %120 = sbr.rel (0) target = $region36
            $region35: #{tpu_custom_call.1} parent=27 // pred_region
              loop: start=0, step=1, limit=1
              $region37: #{tpu_custom_call.1} parent=35 // loop_pre_header
                _
              $region38: #{tpu_custom_call.1} parent=35 // loop_header
                %s123 = sphi 0, %s127
                %p124 = scmp.ge.s32.totalorder %s123, 1
                %s128 = sphi %s114, %s114
                %s129 = sphi %s112, %s112
              $region39: #{tpu_custom_call.1} parent=35 // loop_header_branch
                %126 = sbr.rel (%p124) target = $region43
              $region40: #{tpu_custom_call.1} parent=35 // loop_body
                %v130 = vld [vmem:[%s128] sm:$0xf]
                %131 = vst [vmem:[%s129] sm:$0xf] %v130
                %v132 = vld [vmem:[%s128 + $0x8] sm:$0xf]
                %133 = vst [vmem:[%s129 + $0x4] sm:$0xf] %v132
              $region41: #{tpu_custom_call.1} parent=35 // loop_footer
                %s127 = sadd.s32 1, %s123
              $region42: #{tpu_custom_call.1} parent=35 // loop_footer_branch
                %122 = sbr.rel target = $region38
              $region43: #{tpu_custom_call.1} parent=35 // loop_exit
                _
            $region36: #{tpu_custom_call.1} parent=27 // pred_fallthru
              _
          $region28: #{tpu_custom_call.1} parent=23 // pred_fallthru
            _
          %157 = vnop
        $region24: #{tpu_custom_call.1} parent=19 // pred_fallthru
          _
      $region20: #{tpu_custom_call.1} parent=5 // pred_fallthru
        _
      %p158 = scmp.le.s32.totalorder 1, %s11
      %p159 = scmp.lt.s32.totalorder %s11, 3
      %p160 = pnand %p158, %p159
      %p161 = pneg %p160
      // Predicated region
      $region62: #{tpu_custom_call.1} parent=5 // pred_check
        _
      $region63: #{tpu_custom_call.1} parent=5 // pred_check_branch
        %163 = sbr.rel (%p160) target = $region65
      $region64: #{tpu_custom_call.1} parent=5 // pred_region
        %s164 = ssub.s32 %s11, 1
        %s165 = sand.u32 %s24, 1
        %s166 = sand.u32 %s24, 1
        %s167 = smul.addr %s166, 8
        %s168 = scalar_lea.vmem [#allocation2], %s167
        // Predicated region
        $region66: #{tpu_custom_call.1} parent=64 // pred_check
          %p169 = pneg %p37
        $region67: #{tpu_custom_call.1} parent=64 // pred_check_branch
          %171 = sbr.rel (%p169) target = $region69
        $region68: #{tpu_custom_call.1} parent=64 // pred_region
          _
        $region69: #{tpu_custom_call.1} parent=64 // pred_fallthru
          _
        %s172 = sand.u32 %s24, 1
        %s173 = sand.u32 %s24, 1
        %s174 = smul.addr %s173, 8
        %s175 = scalar_lea.vmem [#allocation2], %s174
        %p176 = pneg %p37
        %p177 = pneg %p34
        %p178 = pneg %p58
        %p179 = pneg %p55
        %p180 = pneg %p84
        %p181 = pneg %p81
        %s182 = sand.u32 %s71, 1
        %s183 = scalar_lea.sflag [#allocation4], %s182
        %s184 = sand.u32 %s71, 1
        %s185 = smul.addr %s184, 8
        %s186 = scalar_lea.vmem [#allocation3], %s185
        %v187 = vld [vmem:[%s168] sm:$0xf]
        %v188 = vld [vmem:[%s168 + $0x4] sm:$0xf]
        %v189 = vunpack.c.l.bf16 %v187
        %v190 = vunpack.c.l.bf16 %v188
        %v191 = vld [vmem:[%s1] sm:$0xff]
        %v192 = vld [vmem:[%s1 + $0x8] sm:$0xff]
        %vm193 = vcmask 31744
        %v195 = vsel %vm193, %v191, 0
        %v198 = vsel %vm193, %v192, 0
        %vm200 = vcmask 1043456
        %v202 = vsel %vm200, %v189, 0
        %204 = vmatprep.subr.mxu0 0.0
        %205 = vmatpush1.msra.mxu0 %v202
        %206 = vmatprep.subr.mxu0 0.0
        %207 = vmatpush1.msra.mxu0 0.0
        %208 = vmatprep.subr.mxu0 0.0
        %209 = vmatpush1.msra.mxu0 0.0
        %210 = vmatprep.subr.mxu0 0.0
        %211 = vmatpush1.msra.mxu0 0.0
        %212 = vmatprep.subr.mxu0 0.0
        %213 = vmatpush1.msra.mxu0 0.0
        %214 = vmatprep.subr.mxu0 0.0
        %215 = vmatpush1.msra.mxu0 0.0
        %216 = vmatprep.subr.mxu0 0.0
        %217 = vmatpush1.msra.mxu0 0.0
        %218 = vmatprep.subr.mxu0 0.0
        %219 = vmatpush1.msra.mxu0 0.0
        %220 = vmatprep.subr.mxu0 0.0
        %221 = vmatpush1.msra.mxu0 0.0
        %222 = vmatprep.subr.mxu0 0.0
        %223 = vmatpush1.msra.mxu0 0.0
        %224 = vmatprep.subr.mxu0 0.0
        %225 = vmatpush1.msra.mxu0 0.0
        %226 = vmatprep.subr.mxu0 0.0
        %227 = vmatpush1.msra.mxu0 0.0
        %228 = vmatprep.subr.mxu0 0.0
        %229 = vmatpush1.msra.mxu0 0.0
        %230 = vmatprep.subr.mxu0 0.0
        %231 = vmatpush1.msra.mxu0 0.0
        %232 = vmatprep.subr.mxu0 0.0
        %233 = vmatpush1.msra.mxu0 0.0
        %234 = vmatprep.subr.mxu0 0.0
        %235 = vmatpush1.msra.mxu0 0.0
        %236 = vmatprep.subr.mxu0 0.0
        %237 = vmatpush1.msra.mxu0 0.0
        %238 = vmatprep.subr.mxu0 0.0
        %239 = vmatpush1.msra.mxu0 0.0
        %240 = vmatprep.subr.mxu0 0.0
        %241 = vmatpush1.msra.mxu0 0.0
        %242 = vmatprep.subr.mxu0 0.0
        %243 = vmatpush1.msra.mxu0 0.0
        %244 = vmatprep.subr.mxu0 0.0
        %245 = vmatpush1.msra.mxu0 0.0
        %246 = vmatprep.subr.mxu0 0.0
        %247 = vmatpush1.msra.mxu0 0.0
        %248 = vmatprep.subr.mxu0 0.0
        %249 = vmatpush1.msra.mxu0 0.0
        %250 = vmatprep.subr.mxu0 0.0
        %251 = vmatpush1.msra.mxu0 0.0
        %252 = vmatprep.subr.mxu0 0.0
        %253 = vmatpush1.msra.mxu0 0.0
        %254 = vmatprep.subr.mxu0 0.0
        %255 = vmatpush1.msra.mxu0 0.0
        %256 = vmatprep.subr.mxu0 0.0
        %257 = vmatpush1.msra.mxu0 0.0
        %258 = vmatprep.subr.mxu0 0.0
        %259 = vmatpush1.msra.mxu0 0.0
        %260 = vmatprep.subr.mxu0 0.0
        %261 = vmatpush1.msra.mxu0 0.0
        %262 = vmatprep.subr.mxu0 0.0
        %263 = vmatpush1.msra.mxu0 0.0
        %264 = vmatprep.subr.mxu0 0.0
        %265 = vmatpush1.msra.mxu0 0.0
        %266 = vmatprep.subr.mxu0 0.0
        %267 = vmatpush1.msra.mxu0 0.0
        %268 = vmatprep.mubr.f32.mxu0 0.0
        %269 = vmatmul.mubr.f32.gmra.mrb[0].mxu0 %v195
        %v270 = vpop.f32.mrb[0].mxu0
        %v271 = vadd.f32 0.0, %v270
        %v272 = vpop.f32.mrb[0].mxu0
        %273 = vmatprep.mubr.f32.mxu0 0.0
        %274 = vmatmul.mubr.f32.gmra.mrb[0].mxu0 %v198
        %v275 = vpop.f32.mrb[0].mxu0
        %v276 = vadd.f32 0.0, %v275
        %v277 = vpop.f32.mrb[0].mxu0
        %278 = vdwg.mxu0
        %v279 = vlaneseq
        %v280 = vshrl.u32 %v279, 7
        %v281 = vsub.s32 4, %v280
        %v282 = vrot.slane %v189, %v281
        %v283 = vmul.f32 %v282, %v271
        %v285 = vrot.slane %v283, 4
        %v287 = vadd.f32 %v271, %v285
        %v288 = vlaneseq
        %v289 = vshrl.u32 %v288, 7
        %v290 = vsub.s32 5, %v289
        %v291 = vrot.slane %v189, %v290
        %v292 = vmul.f32 %v291, %v276
        %v293 = vadd.f32 %v287, %v292
        %v294 = vlaneseq
        %v295 = vshrl.u32 %v294, 7
        %v296 = vsub.s32 6, %v295
        %v297 = vrot.slane %v189, %v296
        %v298 = vmul.f32 %v297, %v276
        %v300 = vrot.slane %v298, 4
        %v302 = vadd.f32 %v293, %v300
        %v304 = vsel %vm200, %v190, 0
        %306 = vmatprep.subr.mxu0 0.0
        %307 = vmatpush1.msra.mxu0 %v304
        %308 = vmatprep.subr.mxu0 0.0
        %309 = vmatpush1.msra.mxu0 0.0
        %310 = vmatprep.subr.mxu0 0.0
        %311 = vmatpush1.msra.mxu0 0.0
        %312 = vmatprep.subr.mxu0 0.0
        %313 = vmatpush1.msra.mxu0 0.0
        %314 = vmatprep.subr.mxu0 0.0
        %315 = vmatpush1.msra.mxu0 0.0
        %316 = vmatprep.subr.mxu0 0.0
        %317 = vmatpush1.msra.mxu0 0.0
        %318 = vmatprep.subr.mxu0 0.0
        %319 = vmatpush1.msra.mxu0 0.0
        %320 = vmatprep.subr.mxu0 0.0
        %321 = vmatpush1.msra.mxu0 0.0
        %322 = vmatprep.subr.mxu0 0.0
        %323 = vmatpush1.msra.mxu0 0.0
        %324 = vmatprep.subr.mxu0 0.0
        %325 = vmatpush1.msra.mxu0 0.0
        %326 = vmatprep.subr.mxu0 0.0
        %327 = vmatpush1.msra.mxu0 0.0
        %328 = vmatprep.subr.mxu0 0.0
        %329 = vmatpush1.msra.mxu0 0.0
        %330 = vmatprep.subr.mxu0 0.0
        %331 = vmatpush1.msra.mxu0 0.0
        %332 = vmatprep.subr.mxu0 0.0
        %333 = vmatpush1.msra.mxu0 0.0
        %334 = vmatprep.subr.mxu0 0.0
        %335 = vmatpush1.msra.mxu0 0.0
        %336 = vmatprep.subr.mxu0 0.0
        %337 = vmatpush1.msra.mxu0 0.0
        %338 = vmatprep.subr.mxu0 0.0
        %339 = vmatpush1.msra.mxu0 0.0
        %340 = vmatprep.subr.mxu0 0.0
        %341 = vmatpush1.msra.mxu0 0.0
        %342 = vmatprep.subr.mxu0 0.0
        %343 = vmatpush1.msra.mxu0 0.0
        %344 = vmatprep.subr.mxu0 0.0
        %345 = vmatpush1.msra.mxu0 0.0
        %346 = vmatprep.subr.mxu0 0.0
        %347 = vmatpush1.msra.mxu0 0.0
        %348 = vmatprep.subr.mxu0 0.0
        %349 = vmatpush1.msra.mxu0 0.0
        %350 = vmatprep.subr.mxu0 0.0
        %351 = vmatpush1.msra.mxu0 0.0
        %352 = vmatprep.subr.mxu0 0.0
        %353 = vmatpush1.msra.mxu0 0.0
        %354 = vmatprep.subr.mxu0 0.0
        %355 = vmatpush1.msra.mxu0 0.0
        %356 = vmatprep.subr.mxu0 0.0
        %357 = vmatpush1.msra.mxu0 0.0
        %358 = vmatprep.subr.mxu0 0.0
        %359 = vmatpush1.msra.mxu0 0.0
        %360 = vmatprep.subr.mxu0 0.0
        %361 = vmatpush1.msra.mxu0 0.0
        %362 = vmatprep.subr.mxu0 0.0
        %363 = vmatpush1.msra.mxu0 0.0
        %364 = vmatprep.subr.mxu0 0.0
        %365 = vmatpush1.msra.mxu0 0.0
        %366 = vmatprep.subr.mxu0 0.0
        %367 = vmatpush1.msra.mxu0 0.0
        %368 = vmatprep.subr.mxu0 0.0
        %369 = vmatpush1.msra.mxu0 0.0
        %370 = vmatprep.mubr.f32.mxu0 0.0
        %371 = vmatmul.mubr.f32.gmra.mrb[0].mxu0 %v195
        %v372 = vpop.f32.mrb[0].mxu0
        %v373 = vadd.f32 0.0, %v372
        %v374 = vpop.f32.mrb[0].mxu0
        %375 = vmatprep.mubr.f32.mxu0 0.0
        %376 = vmatmul.mubr.f32.gmra.mrb[0].mxu0 %v198
        %v377 = vpop.f32.mrb[0].mxu0
        %v378 = vadd.f32 0.0, %v377
        %v379 = vpop.f32.mrb[0].mxu0
        %380 = vdwg.mxu0
        %v381 = vlaneseq
        %v382 = vshrl.u32 %v381, 7
        %v383 = vsub.s32 4, %v382
        %v384 = vrot.slane %v190, %v383
        %v385 = vmul.f32 %v384, %v373
        %v387 = vrot.slane %v385, 4
        %v389 = vadd.f32 %v373, %v387
        %v390 = vlaneseq
        %v391 = vshrl.u32 %v390, 7
        %v392 = vsub.s32 5, %v391
        %v393 = vrot.slane %v190, %v392
        %v394 = vmul.f32 %v393, %v378
        %v395 = vadd.f32 %v389, %v394
        %v396 = vlaneseq
        %v397 = vshrl.u32 %v396, 7
        %v398 = vsub.s32 6, %v397
        %v399 = vrot.slane %v190, %v398
        %v400 = vmul.f32 %v399, %v378
        %v402 = vrot.slane %v400, 4
        %v404 = vadd.f32 %v395, %v402
        %v406 = vrot.slane %v404, 4
        %v408 = vsel %vm200, %v302, %v406
        %409 = vst [vmem:[%s186] sm:$0xff] %v408
        %s410 = sand.u32 %s71, 1
        %s411 = scalar_lea.sflag [#allocation4], %s410
        %s412 = sand.u32 %s71, 1
        %s413 = smul.addr %s412, 8
        %s414 = scalar_lea.vmem [#allocation3], %s413
        // Predicated region
        $region70: #{tpu_custom_call.1} parent=64 // pred_check
          %p415 = pneg %p81
        $region71: #{tpu_custom_call.1} parent=64 // pred_check_branch
          %417 = sbr.rel (%p415) target = $region73
        $region72: #{tpu_custom_call.1} parent=64 // pred_region
          %s419 = ssub.s32 128, 128
          %420 = vsyncadd %s411, %s419
          %s421 = smul.addr %s16, 128
          %s422 = scalar_lea.hbm %s2, %s421
          %s424 = sshll.u32 %s414, 4
          %s425 = int_to_ptr.vmem [resolvable:$true] %s424
          %427 = dma.vmem_to_hbm [thread:$0]  %s425, 128, %s422, %s411
        $region73: #{tpu_custom_call.1} parent=64 // pred_fallthru
          _
      $region65: #{tpu_custom_call.1} parent=5 // pred_fallthru
        _
      %p428 = scmp.le.s32.totalorder 2, %s11
      // Predicated region
      $region74: #{tpu_custom_call.1} parent=5 // pred_check
        %p429 = pneg %p428
      $region75: #{tpu_custom_call.1} parent=5 // pred_check_branch
        %431 = sbr.rel (%p429) target = $region77
      $region76: #{tpu_custom_call.1} parent=5 // pred_region
        %s432 = ssub.s32 %s11, 2
        // Predicated region
        $region78: #{tpu_custom_call.1} parent=76 // pred_check
          %p433 = pneg %p87
        $region79: #{tpu_custom_call.1} parent=76 // pred_check_branch
          %435 = sbr.rel (%p433) target = $region81
        $region80: #{tpu_custom_call.1} parent=76 // pred_region
          %s436 = sand.u32 %s72, 1
          %s437 = scalar_lea.sflag [#allocation4], %s436
          %s438 = sand.u32 %s72, 1
          %s439 = smul.addr %s438, 8
          %s440 = scalar_lea.vmem [#allocation3], %s439
          %441 = dma.done %s437, 128
        $region81: #{tpu_custom_call.1} parent=76 // pred_fallthru
          _
      $region77: #{tpu_custom_call.1} parent=5 // pred_fallthru
        _
    $region6: #{tpu_custom_call.1} parent=1 // loop_footer
      %s15 = sadd.s32 1, %s11
    $region7: #{tpu_custom_call.1} parent=1 // loop_footer_branch
      %10 = sbr.rel target = $region3
    $region8: #{tpu_custom_call.1} parent=1 // loop_exit
      _
    %442 = vsyncpa [#allocation4], 1
    %s443 = scalar_lea.sflag [#allocation4], 1
    %444 = vsyncpa %s443, 1

</llo_original>
